<compile_context>
chip_gen: v7x
topology: tpu7x:2x2x1
jax: 0.10.0
libtpu: 0.0.40
codegen_flags: <defaults>
</compile_context>

<pallas_src>
import jax
import jax.numpy as jnp
from jax import lax
from jax.experimental import pallas as pl
from jax.experimental.pallas import tpu as pltpu

LANE = 128     # TPU lane width
SUBLANE = 8    # TPU sublane width


def mlp_kernel(x_ref, w1_ref, b1_ref, w2_ref, b2_ref, o_ref):
    # x_ref:  (TB, D_in)        VMEM  (batch tile)
    # w1_ref: (H, D_in)         VMEM  (PyTorch layout; contract on dim 1 == x @ W1^T)
    # b1_ref: (1, H)            VMEM
    # w2_ref: (O_pad8, H)       VMEM  (PyTorch layout, zero-padded to 8 sublanes)
    # b2_ref: (O_pad8, 1)       VMEM
    # o_ref:  (O_pad8, TB)      VMEM  (compact transposed output; batch on lanes)

    # First linear: x @ W1^T (MXU, f32 accumulate).  Cast x to the weight dtype
    # (no-op for f32; native bf16 MXU path for bf16 params).
    h = lax.dot_general(
        x_ref[...].astype(w1_ref.dtype), w1_ref[...],
        dimension_numbers=(((1,), (1,)), ((), ())),
        preferred_element_type=jnp.float32,
    )
    # Bias + ReLU in f32 on the VPU (b1 (1,H) broadcasts over the batch tile).
    h = jnp.maximum(h + b1_ref[...], 0.0)

    # Second linear, transposed: y^T = W2_pad @ h^T -> (O_pad8, TB).
    y_t = lax.dot_general(
        w2_ref[...], h.astype(w2_ref.dtype),
        dimension_numbers=(((1,), (1,)), ((), ())),
        preferred_element_type=jnp.float32,
    )
    o_ref[...] = (y_t + b2_ref[...]).astype(o_ref.dtype)


def prepare_params(w1, b1, w2, b2):
    """One-time parameter prep (outside the per-call hot path).

    Keeps PyTorch [out, in] layout (no transposes); zero-pads the second layer's
    output dim up to a multiple of 8 (sublanes) so the kernel's transposed store
    is a dense (8, tb) block.  The padded rows stay zero (W2 and b2 padded with 0).
    """
    H = w1.shape[0]
    O = w2.shape[0]
    O_pad = max(SUBLANE, ((O + SUBLANE - 1) // SUBLANE) * SUBLANE)
    w2_pad = jnp.zeros((O_pad, w2.shape[1]), w2.dtype).at[:O, :].set(w2)
    b2_pad = jnp.zeros((O_pad,), b2.dtype).at[:O].set(b2)
    return (w1, b1.reshape(1, H), w2_pad, b2_pad.reshape(O_pad, 1), O)


def classifier_forward(x, params, *, block_b=8192):
    """x: (B, D_in) activations; params: output of prepare_params (PyTorch layout)."""
    w1, b1_2d, w2_pad, b2_2d, out_dim = params
    B, D_in = x.shape
    H = w1.shape[0]
    O_pad = w2_pad.shape[0]

    if B <= block_b:
        # Everything fits in VMEM trivially: single invocation, no grid scaffolding,
        # whole arrays explicitly VMEM-resident, same compact transposed output.
        vmem = pl.BlockSpec(memory_space=pltpu.MemorySpace.VMEM)
        y_t = pl.pallas_call(
            mlp_kernel,
            out_shape=jax.ShapeDtypeStruct((O_pad, B), jnp.float32),
            in_specs=[vmem, vmem, vmem, vmem, vmem],
            out_specs=vmem,
        )(x, w1, b1_2d, w2_pad, b2_2d)
        return y_t[:out_dim, :].T

    # Large-batch path: tile the batch, keep weights/biases VMEM-resident (constant
    # index_map -> fetched once), double-buffer the x stream, and let megacore chips
    # shard the batch across TensorCores.
    #
    # Tile selection: big tiles amortize the ~0.35us per-grid-step overhead; cap so
    # there are >= 4 grid steps (v7x has 2 TCs); keep a multiple of 128 so the
    # transposed (O_pad, tb) output block is lane-dense.
    cap = -(-B // 4)                    # cdiv(B, 4)
    cap = -(-cap // LANE) * LANE        # round up to multiple of 128
    tb = max(LANE, min(block_b, cap))
    tb = (tb // LANE) * LANE
    # VMEM budget at tb=8192 (f32): 2x x-buffers ~2 MiB + 2x out-buffers ~0.5 MiB
    # + h temp ~4 MiB + weights (tiny) ~= 7 MiB -> fits v5e's 16 MiB scoped default
    # and v7x's 32 MiB default; no vmem_limit_bytes override needed.

    grid = (pl.cdiv(B, tb),)
    y_t = pl.pallas_call(
        mlp_kernel,
        out_shape=jax.ShapeDtypeStruct((O_pad, B), jnp.float32),
        grid=grid,
        in_specs=[
            pl.BlockSpec((tb, D_in), lambda i: (i, 0)),       # streamed batch tile
            pl.BlockSpec((H, D_in), lambda i: (0, 0)),        # resident weights
            pl.BlockSpec((1, H), lambda i: (0, 0)),
            pl.BlockSpec((O_pad, H), lambda i: (0, 0)),
            pl.BlockSpec((O_pad, 1), lambda i: (0, 0)),
        ],
        out_specs=pl.BlockSpec((O_pad, tb), lambda i: (0, i)),  # batch on lanes
        compiler_params=pltpu.CompilerParams(
            dimension_semantics=("parallel",)),
    )(x, w1, b1_2d, w2_pad, b2_2d)
    # Tiny post-op: 2 useful rows, then transpose to the PyTorch (B, out_dim) layout.
    return y_t[:out_dim, :].T


if __name__ == "__main__":
    # Shapes implied by the module: embeddings of dim 32, hidden_dim=128 (default),
    # output_dim=2 (default); small batch of 8.
    B, D_IN, HIDDEN, OUT = 8, 32, 128, 2

    key = jax.random.PRNGKey(0)
    kx, kw1, kb1, kw2, kb2, kx2 = jax.random.split(key, 6)

    x = jax.random.normal(kx, (B, D_IN), dtype=jnp.float32)
    # Deterministic "PyTorch-style" parameters (uniform, bounded like nn.Linear init).
    w1 = jax.random.uniform(kw1, (HIDDEN, D_IN), jnp.float32, -0.1, 0.1)
    b1 = jax.random.uniform(kb1, (HIDDEN,), jnp.float32, -0.1, 0.1)
    w2 = jax.random.uniform(kw2, (OUT, HIDDEN), jnp.float32, -0.1, 0.1)
    b2 = jax.random.uniform(kb2, (OUT,), jnp.float32, -0.1, 0.1)

    params = prepare_params(w1, b1, w2, b2)

    # Pure-JAX reference of nn.Sequential(Linear, ReLU, Linear).
    def ref_fn(xv):
        return jnp.maximum(xv @ w1.T + b1, 0.0) @ w2.T + b2

    # --- small-batch (no-grid) path ---
    out = classifier_forward(x, params)
    jax.block_until_ready(out)
    assert out.shape == (B, OUT)
    assert jnp.allclose(out, ref_fn(x), atol=1e-5, rtol=1e-5)

    # --- batch-tiled path (non-multiple batch exercises the masked partial block) ---
    B2 = 1000
    x2 = jax.random.normal(kx2, (B2, D_IN), dtype=jnp.float32)
    out2 = classifier_forward(x2, params, block_b=256)
    jax.block_until_ready(out2)
    assert out2.shape == (B2, OUT)
    assert jnp.allclose(out2, ref_fn(x2), atol=1e-5, rtol=1e-5)

    print("KERNEL_OK")
</pallas_src>

<mosaic_0001>
module attributes {stable_mosaic.version = 11 : i64} {
  func.func @mlp_kernel(%arg0: memref<8x32xf32, #tpu.memory_space<vmem>>, %arg1: memref<128x32xf32, #tpu.memory_space<vmem>>, %arg2: memref<1x128xf32, #tpu.memory_space<vmem>>, %arg3: memref<8x128xf32, #tpu.memory_space<vmem>>, %arg4: memref<8x1xf32, #tpu.memory_space<vmem>>, %arg5: memref<8x8xf32, #tpu.memory_space<vmem>>) attributes {dimension_semantics = [], scalar_prefetch = 0 : i64, scratch_operands = 0 : i64, tpu.core_type = #tpu.core_type<tc>} {
    %c0 = arith.constant 0 : index
    %c0_0 = arith.constant 0 : index
    %0 = vector.load %arg0[%c0, %c0_0] : memref<8x32xf32, #tpu.memory_space<vmem>>, vector<8x32xf32>
    %c0_1 = arith.constant 0 : index
    %c0_2 = arith.constant 0 : index
    %1 = vector.load %arg1[%c0_1, %c0_2] : memref<128x32xf32, #tpu.memory_space<vmem>>, vector<128x32xf32>
    %cst = arith.constant dense<0.000000e+00> : vector<8x128xf32>
    %2 = tpu.matmul %0, %1, %cst {dimension_numbers = #tpu.dot_dimension_numbers<[1], [1], [0], [0], [0, 0, 1, 0], [], []>} : vector<8x32xf32>, vector<128x32xf32>, vector<8x128xf32> -> vector<8x128xf32>
    %c0_3 = arith.constant 0 : index
    %c0_4 = arith.constant 0 : index
    %3 = vector.load %arg2[%c0_3, %c0_4] : memref<1x128xf32, #tpu.memory_space<vmem>>, vector<1x128xf32>
    %4 = vector.broadcast %3 : vector<1x128xf32> to vector<8x128xf32>
    %5 = arith.addf %2, %4 : vector<8x128xf32>
    %cst_5 = arith.constant 0.000000e+00 : f32
    %6 = vector.broadcast %cst_5 : f32 to vector<8x128xf32>
    %7 = arith.maximumf %5, %6 : vector<8x128xf32>
    %c0_6 = arith.constant 0 : index
    %c0_7 = arith.constant 0 : index
    %8 = vector.load %arg3[%c0_6, %c0_7] : memref<8x128xf32, #tpu.memory_space<vmem>>, vector<8x128xf32>
    %cst_8 = arith.constant dense<0.000000e+00> : vector<8x8xf32>
    %9 = tpu.matmul %8, %7, %cst_8 {dimension_numbers = #tpu.dot_dimension_numbers<[1], [1], [0], [0], [0, 0, 1, 0], [], []>} : vector<8x128xf32>, vector<8x128xf32>, vector<8x8xf32> -> vector<8x8xf32>
    %c0_9 = arith.constant 0 : index
    %c0_10 = arith.constant 0 : index
    %10 = vector.load %arg4[%c0_9, %c0_10] : memref<8x1xf32, #tpu.memory_space<vmem>>, vector<8x1xf32>
    %11 = vector.broadcast %10 : vector<8x1xf32> to vector<8x8xf32>
    %12 = arith.addf %9, %11 : vector<8x8xf32>
    %c0_11 = arith.constant 0 : index
    %c0_12 = arith.constant 0 : index
    %13 = vector.load %arg5[%c0_11, %c0_12] : memref<8x8xf32, #tpu.memory_space<vmem>>, vector<8x8xf32>
    tpu.vector_store %arg5[%c0_11, %c0_12], %12 {strides = array<i32>} : memref<8x8xf32, #tpu.memory_space<vmem>>, vector<8x8xf32>,
    return
  }
}

</mosaic_0001>

<llo_original>
// kernel: tpu_custom_call.1
$region0: #{tpu_custom_call.1}
  #allocation0 [shape = 'u32[]', space=smem, size = 0x4, offset = 0x4, fixed_abs, tag = 'smem constant byte address 0x4 - core index']
  #allocation1 [shape = 'u32[144,128]{1,0:T(1,128)}', space=vmem, size = 0x12000, scoped, tag = 'internal scratch']
  %s0 = inlined_call_operand.vmem [shape: f32[8,32], index: 0, kind: input, shape index: {}]
  %s1 = inlined_call_operand.vmem [shape: f32[128,32], index: 1, kind: input, shape index: {}]
  %s2 = inlined_call_operand.vmem [shape: f32[1,128], index: 2, kind: input, shape index: {}]
  %s3 = inlined_call_operand.vmem [shape: f32[8,128], index: 3, kind: input, shape index: {}]
  %s4 = inlined_call_operand.vmem [shape: f32[8,1], index: 4, kind: input, shape index: {}]
  %s5 = inlined_call_operand.hbm [shape: f32[8,8], index: 5, kind: output, shape index: {}]
  %s6 = sld [smem:[#allocation0]]
  $region30: #{tpu_custom_call.1} parent=0
    _
  %s8 = ssub.s32 1, %s6
  %s9 = scalar_select 0, %s8, %s6
  $region1: #{tpu_custom_call.1} parent=0
    #allocation2 [shape = 'u8[4096]{0}', space=vmem, size = 0x1000, scoped, tag = 'output window, operand 0, single buffered']
    #allocation3 [shape = 's32[1]{0}', space=sflag, size = 0x4, scoped, tag = 'scoped memory for tpu_custom_call.1']
    %10 = vsyncpa [#allocation3], 0
    // Predicated region
    $region2: #{tpu_custom_call.1} parent=1 // pred_check
      _
    $region3: #{tpu_custom_call.1} parent=1 // pred_check_branch
      %12 = sbr.rel (0) target = $region5
    $region4: #{tpu_custom_call.1} parent=1 // pred_region
      _
    $region5: #{tpu_custom_call.1} parent=1 // pred_fallthru
      _
    // Predicated region
    $region6: #{tpu_custom_call.1} parent=1 // pred_check
      _
    $region7: #{tpu_custom_call.1} parent=1 // pred_check_branch
      %14 = sbr.rel (0) target = $region9
    $region8: #{tpu_custom_call.1} parent=1 // pred_region
      _
    $region9: #{tpu_custom_call.1} parent=1 // pred_fallthru
      _
    // Predicated region
    $region10: #{tpu_custom_call.1} parent=1 // pred_check
      _
    $region11: #{tpu_custom_call.1} parent=1 // pred_check_branch
      %16 = sbr.rel (0) target = $region13
    $region12: #{tpu_custom_call.1} parent=1 // pred_region
      _
    $region13: #{tpu_custom_call.1} parent=1 // pred_fallthru
      _
    // Predicated region
    $region14: #{tpu_custom_call.1} parent=1 // pred_check
      _
    $region15: #{tpu_custom_call.1} parent=1 // pred_check_branch
      %18 = sbr.rel (0) target = $region17
    $region16: #{tpu_custom_call.1} parent=1 // pred_region
      _
    $region17: #{tpu_custom_call.1} parent=1 // pred_fallthru
      _
    // Predicated region
    $region18: #{tpu_custom_call.1} parent=1 // pred_check
      _
    $region19: #{tpu_custom_call.1} parent=1 // pred_check_branch
      %20 = sbr.rel (0) target = $region21
    $region20: #{tpu_custom_call.1} parent=1 // pred_region
      _
    $region21: #{tpu_custom_call.1} parent=1 // pred_fallthru
      _
    %v21 = vld [vmem:[%s0] sm:$0xff]
    %v22 = vld [vmem:[%s1] sm:$0xff]
    %v23 = vld [vmem:[%s1 + $0x8] sm:$0xff]
    %v24 = vld [vmem:[%s1 + $0x10] sm:$0xff]
    %v25 = vld [vmem:[%s1 + $0x18] sm:$0xff]
    %v26 = vld [vmem:[%s1 + $0x20] sm:$0xff]
    %v27 = vld [vmem:[%s1 + $0x28] sm:$0xff]
    %v28 = vld [vmem:[%s1 + $0x30] sm:$0xff]
    %v29 = vld [vmem:[%s1 + $0x38] sm:$0xff]
    %v30 = vld [vmem:[%s1 + $0x40] sm:$0xff]
    %v31 = vld [vmem:[%s1 + $0x48] sm:$0xff]
    %v32 = vld [vmem:[%s1 + $0x50] sm:$0xff]
    %v33 = vld [vmem:[%s1 + $0x58] sm:$0xff]
    %v34 = vld [vmem:[%s1 + $0x60] sm:$0xff]
    %v35 = vld [vmem:[%s1 + $0x68] sm:$0xff]
    %v36 = vld [vmem:[%s1 + $0x70] sm:$0xff]
    %v37 = vld [vmem:[%s1 + $0x78] sm:$0xff]
    %v38 = vld [vmem:[%s2] sm:$0x1]
    %v40 = vlaneseq
    %v41 = vshrl.u32 %v40, 7
    %v42 = vsub.s32 0, %v41
    %v43 = vrot.slane %v38, %v42
    %vm45 = vcmask 261120
    %v47 = vsel %vm45, %v21, 0
    %v50 = vsel %vm45, %v22, 0
    %v53 = vsel %vm45, %v23, 0
    %v56 = vsel %vm45, %v24, 0
    %v59 = vsel %vm45, %v25, 0
    %v62 = vsel %vm45, %v26, 0
    %v65 = vsel %vm45, %v27, 0
    %v68 = vsel %vm45, %v28, 0
    %v71 = vsel %vm45, %v29, 0
    %v74 = vsel %vm45, %v30, 0
    %v77 = vsel %vm45, %v31, 0
    %v80 = vsel %vm45, %v32, 0
    %v83 = vsel %vm45, %v33, 0
    %v86 = vsel %vm45, %v34, 0
    %v89 = vsel %vm45, %v35, 0
    %v92 = vsel %vm45, %v36, 0
    %v95 = vsel %vm45, %v37, 0
    %97 = vmatprep.subr.mxu0 0.0
    %98 = vmatpush1.xpose.msra.mxu0 %v50
    %99 = vmatprep.subr.mxu0 0.0
    %100 = vmatpush1.xpose.msra.mxu0 %v53
    %101 = vmatprep.subr.mxu0 0.0
    %102 = vmatpush1.xpose.msra.mxu0 %v56
    %103 = vmatprep.subr.mxu0 0.0
    %104 = vmatpush1.xpose.msra.mxu0 %v59
    %105 = vmatprep.subr.mxu0 0.0
    %106 = vmatpush1.xpose.msra.mxu0 %v62
    %107 = vmatprep.subr.mxu0 0.0
    %108 = vmatpush1.xpose.msra.mxu0 %v65
    %109 = vmatprep.subr.mxu0 0.0
    %110 = vmatpush1.xpose.msra.mxu0 %v68
    %111 = vmatprep.subr.mxu0 0.0
    %112 = vmatpush1.xpose.msra.mxu0 %v71
    %113 = vmatprep.subr.mxu0 0.0
    %114 = vmatpush1.xpose.msra.mxu0 %v74
    %115 = vmatprep.subr.mxu0 0.0
    %116 = vmatpush1.xpose.msra.mxu0 %v77
    %117 = vmatprep.subr.mxu0 0.0
    %118 = vmatpush1.xpose.msra.mxu0 %v80
    %119 = vmatprep.subr.mxu0 0.0
    %120 = vmatpush1.xpose.msra.mxu0 %v83
    %121 = vmatprep.subr.mxu0 0.0
    %122 = vmatpush1.xpose.msra.mxu0 %v86
    %123 = vmatprep.subr.mxu0 0.0
    %124 = vmatpush1.xpose.msra.mxu0 %v89
    %125 = vmatprep.subr.mxu0 0.0
    %126 = vmatpush1.xpose.msra.mxu0 %v92
    %127 = vmatprep.subr.mxu0 0.0
    %128 = vmatpush1.xpose.msra.mxu0 %v95
    %129 = vmatprep.subr.mxu0 0.0
    %130 = vmatpush1.xpose.msra.mxu0 0.0
    %131 = vmatprep.subr.mxu0 0.0
    %132 = vmatpush1.xpose.msra.mxu0 0.0
    %133 = vmatprep.subr.mxu0 0.0
    %134 = vmatpush1.xpose.msra.mxu0 0.0
    %135 = vmatprep.subr.mxu0 0.0
    %136 = vmatpush1.xpose.msra.mxu0 0.0
    %137 = vmatprep.subr.mxu0 0.0
    %138 = vmatpush1.xpose.msra.mxu0 0.0
    %139 = vmatprep.subr.mxu0 0.0
    %140 = vmatpush1.xpose.msra.mxu0 0.0
    %141 = vmatprep.subr.mxu0 0.0
    %142 = vmatpush1.xpose.msra.mxu0 0.0
    %143 = vmatprep.subr.mxu0 0.0
    %144 = vmatpush1.xpose.msra.mxu0 0.0
    %145 = vmatprep.subr.mxu0 0.0
    %146 = vmatpush1.xpose.msra.mxu0 0.0
    %147 = vmatprep.subr.mxu0 0.0
    %148 = vmatpush1.xpose.msra.mxu0 0.0
    %149 = vmatprep.subr.mxu0 0.0
    %150 = vmatpush1.xpose.msra.mxu0 0.0
    %151 = vmatprep.subr.mxu0 0.0
    %152 = vmatpush1.xpose.msra.mxu0 0.0
    %153 = vmatprep.subr.mxu0 0.0
    %154 = vmatpush1.xpose.msra.mxu0 0.0
    %155 = vmatprep.subr.mxu0 0.0
    %156 = vmatpush1.xpose.msra.mxu0 0.0
    %157 = vmatprep.subr.mxu0 0.0
    %158 = vmatpush1.xpose.msra.mxu0 0.0
    %159 = vmatprep.subr.mxu0 0.0
    %160 = vmatpush1.xpose.msra.mxu0 0.0
    %161 = vmatprep.mubr.f32.mxu0 0.0
    %162 = vmatmul.mubr.f32.gmra.mrb[0].mxu0 %v47
    %v163 = vpop.f32.mrb[0].mxu0
    %v164 = vadd.f32 %v43, %v163
    %v165 = vpop.f32.mrb[0].mxu0
    %166 = vdwg.mxu0
    %v167 = vmax.f32 %v164, 0.0
    %v168 = vld [vmem:[%s3] sm:$0xff]
    %v169 = vld [vmem:[%s4] sm:$0xff]
    %171 = vset.pattern.permute.xlu0 0
    %172 = vperm.xlu0 %171, %v169
    %v173 = vpop.permute.xlu0 %172
    %175 = vmatprep.subr.mxu0 0.0
    %176 = vmatpush1.xpose.msra.mxu0 %v167
    %177 = vmatprep.subr.mxu0 0.0
    %178 = vmatpush1.xpose.msra.mxu0 0.0
    %179 = vmatprep.subr.mxu0 0.0
    %180 = vmatpush1.xpose.msra.mxu0 0.0
    %181 = vmatprep.subr.mxu0 0.0
    %182 = vmatpush1.xpose.msra.mxu0 0.0
    %183 = vmatprep.subr.mxu0 0.0
    %184 = vmatpush1.xpose.msra.mxu0 0.0
    %185 = vmatprep.subr.mxu0 0.0
    %186 = vmatpush1.xpose.msra.mxu0 0.0
    %187 = vmatprep.subr.mxu0 0.0
    %188 = vmatpush1.xpose.msra.mxu0 0.0
    %189 = vmatprep.subr.mxu0 0.0
    %190 = vmatpush1.xpose.msra.mxu0 0.0
    %191 = vmatprep.subr.mxu0 0.0
    %192 = vmatpush1.xpose.msra.mxu0 0.0
    %193 = vmatprep.subr.mxu0 0.0
    %194 = vmatpush1.xpose.msra.mxu0 0.0
    %195 = vmatprep.subr.mxu0 0.0
    %196 = vmatpush1.xpose.msra.mxu0 0.0
    %197 = vmatprep.subr.mxu0 0.0
    %198 = vmatpush1.xpose.msra.mxu0 0.0
    %199 = vmatprep.subr.mxu0 0.0
    %200 = vmatpush1.xpose.msra.mxu0 0.0
    %201 = vmatprep.subr.mxu0 0.0
    %202 = vmatpush1.xpose.msra.mxu0 0.0
    %203 = vmatprep.subr.mxu0 0.0
    %204 = vmatpush1.xpose.msra.mxu0 0.0
    %205 = vmatprep.subr.mxu0 0.0
    %206 = vmatpush1.xpose.msra.mxu0 0.0
    %207 = vmatprep.subr.mxu0 0.0
    %208 = vmatpush1.xpose.msra.mxu0 0.0
    %209 = vmatprep.subr.mxu0 0.0
    %210 = vmatpush1.xpose.msra.mxu0 0.0
    %211 = vmatprep.subr.mxu0 0.0
    %212 = vmatpush1.xpose.msra.mxu0 0.0
    %213 = vmatprep.subr.mxu0 0.0
    %214 = vmatpush1.xpose.msra.mxu0 0.0
    %215 = vmatprep.subr.mxu0 0.0
    %216 = vmatpush1.xpose.msra.mxu0 0.0
    %217 = vmatprep.subr.mxu0 0.0
    %218 = vmatpush1.xpose.msra.mxu0 0.0
    %219 = vmatprep.subr.mxu0 0.0
    %220 = vmatpush1.xpose.msra.mxu0 0.0
    %221 = vmatprep.subr.mxu0 0.0
    %222 = vmatpush1.xpose.msra.mxu0 0.0
    %223 = vmatprep.subr.mxu0 0.0
    %224 = vmatpush1.xpose.msra.mxu0 0.0
    %225 = vmatprep.subr.mxu0 0.0
    %226 = vmatpush1.xpose.msra.mxu0 0.0
    %227 = vmatprep.subr.mxu0 0.0
    %228 = vmatpush1.xpose.msra.mxu0 0.0
    %229 = vmatprep.subr.mxu0 0.0
    %230 = vmatpush1.xpose.msra.mxu0 0.0
    %231 = vmatprep.subr.mxu0 0.0
    %232 = vmatpush1.xpose.msra.mxu0 0.0
    %233 = vmatprep.subr.mxu0 0.0
    %234 = vmatpush1.xpose.msra.mxu0 0.0
    %235 = vmatprep.subr.mxu0 0.0
    %236 = vmatpush1.xpose.msra.mxu0 0.0
    %237 = vmatprep.subr.mxu0 0.0
    %238 = vmatpush1.xpose.msra.mxu0 0.0
    %239 = vmatprep.mubr.f32.mxu0 0.0
    %240 = vmatmul.mubr.f32.gmra.mrb[0].mxu0 %v168
    %v241 = vpop.f32.mrb[0].mxu0
    %v242 = vadd.f32 %v173, %v241
    %v243 = vpop.f32.mrb[0].mxu0
    %244 = vdwg.mxu0
    %vm245 = vcmask 64512
    %246 = vst.msk [vmem:[#allocation2] sm:$0xff] %vm245, %v242
    // Predicated region
    $region22: #{tpu_custom_call.1} parent=1 // pred_check
      _
    $region23: #{tpu_custom_call.1} parent=1 // pred_check_branch
      %248 = sbr.rel (0) target = $region25
    $region24: #{tpu_custom_call.1} parent=1 // pred_region
      %s250 = ssub.s32 128, 128
      %251 = vsyncadd [#allocation3], %s250
      %s253 = sshll.u32 [#allocation2], 4
      %s254 = int_to_ptr.vmem [resolvable:$true] %s253
      %256 = dma.vmem_to_hbm [thread:$0]  %s254, 128, %s5, [#allocation3]
    $region25: #{tpu_custom_call.1} parent=1 // pred_fallthru
      _
    // Predicated region
    $region26: #{tpu_custom_call.1} parent=1 // pred_check
      _
    $region27: #{tpu_custom_call.1} parent=1 // pred_check_branch
      %258 = sbr.rel (0) target = $region29
    $region28: #{tpu_custom_call.1} parent=1 // pred_region
      %259 = dma.done [#allocation3], 128
    $region29: #{tpu_custom_call.1} parent=1 // pred_fallthru
      _
    %260 = vsyncpa [#allocation3], 1

</llo_original>
